<compile_context>
chip_gen: v7x
topology: tpu7x:2x2x1
jax: 0.10.0
libtpu: 0.0.40
codegen_flags: <defaults>
</compile_context>

<pallas_src>
import functools
import math

import jax
import jax.numpy as jnp
from jax import lax
from jax.experimental import pallas as pl
from jax.experimental.pallas import tpu as pltpu


def _pe_kernel(seed_ref, x_ref, pe_ref, o_ref, *, dropout_p, apply_dropout,
               total_rows, row_block, cols):
    """Elementwise hot path: x + pos_encoding (+ inverted dropout)."""
    x = x_ref[...]                       # (1, row_block, cols)
    pe = pe_ref[...]                     # (row_block, cols), same dtype as x
    y = x + pe[None, :, :]

    if apply_dropout:
        rblk = pl.program_id(0)          # row-tile index
        b = pl.program_id(1)             # batch index (fastest grid axis)

        # Unique per-element counter over the whole (B, R, C) tensor so every
        # tile / batch step gets an independent mask.
        row0 = (rblk * row_block).astype(jnp.uint32)
        rows = lax.broadcasted_iota(jnp.int32, y.shape, 1).astype(jnp.uint32) + row0
        colsi = lax.broadcasted_iota(jnp.int32, y.shape, 2).astype(jnp.uint32)
        ctr = (b.astype(jnp.uint32) * jnp.uint32(total_rows) + rows) \
            * jnp.uint32(cols) + colsi

        seed_u = seed_ref[0].astype(jnp.uint32)
        h = ctr ^ (seed_u * jnp.uint32(0x9E3779B9))
        # lowbias32 integer mixer -> ~uniform 32 random bits (pure VPU int ops)
        h = h ^ (h >> jnp.uint32(16))
        h = h * jnp.uint32(0x7FEB352D)
        h = h ^ (h >> jnp.uint32(15))
        h = h * jnp.uint32(0x846CA68B)
        h = h ^ (h >> jnp.uint32(16))

        # Keep with probability (1 - p).  Compare the top 31 bits as signed
        # int32 against an integer threshold: no float-uniform construction,
        # no unsigned compares.
        h31 = (h >> jnp.uint32(1)).astype(jnp.int32)          # in [0, 2^31)
        thresh = min(int(round(dropout_p * 2147483648.0)), 2147483647)
        keep = h31 >= jnp.int32(thresh)
        scale = jnp.asarray(1.0 / (1.0 - dropout_p), dtype=y.dtype)
        y = jnp.where(keep, y * scale, jnp.zeros_like(y))

    o_ref[...] = y.astype(o_ref.dtype)


def make_pos_encoding(dim_model, max_len, dtype=jnp.float32):
    """Deterministic buffer, identical construction to the PyTorch __init__."""
    positions = jnp.arange(0, max_len, dtype=jnp.float32).reshape(-1, 1)      # (L, 1)
    division_term = jnp.exp(
        jnp.arange(0, dim_model, 2, dtype=jnp.float32)
        * (-math.log(10000.0) / dim_model)
    )                                                                          # (D/2,)
    pe = jnp.zeros((max_len, dim_model), dtype=jnp.float32)
    pe = pe.at[:, 0::2].set(jnp.sin(positions * division_term))
    pe = pe.at[:, 1::2].set(jnp.cos(positions * division_term))
    # unsqueeze(0).transpose(0, 1) -> (max_len, 1, dim_model)
    return pe[:, None, :].astype(dtype)


def positional_encoding_forward(token_embedding, pos_encoding, *,
                                dropout_p=0.0, train=False, seed=0):
    """forward(token_embedding) = dropout(token_embedding + pos_encoding[:S])."""
    S, B, D = token_embedding.shape
    dtype = token_embedding.dtype
    itemsize = jnp.dtype(dtype).itemsize

    # pe slice, cast to activation dtype (half-width DMA / same vreg packing
    # when activations are bf16).
    pe2d = pos_encoding[:S, 0, :].astype(dtype)                # (S, D)

    # Lane-dense layout plumbing: batch-major, then flatten the (S, D) plane
    # to 128-wide rows when D alone is not already lane-dense.
    x_bsd = jnp.transpose(token_embedding, (1, 0, 2))          # (B, S, D)
    if D % 128 == 0 or (S * D) % 128 != 0:
        R, C = S, D
    else:
        R, C = (S * D) // 128, 128
    x3 = x_bsd.reshape(B, R, C)
    pe2 = pe2d.reshape(R, C)

    # Row-tile sizing: largest multiple of 8 whose block stays <= ~2 MiB, so
    # double-buffered x/out/pe all fit the scoped-VMEM budget on v5e/v6e/v7x.
    max_rows = max(8, (2 * 1024 * 1024) // max(1, C * itemsize))
    max_rows = (max_rows // 8) * 8
    tile_R = R if R <= max_rows else max_rows
    grid = (pl.cdiv(R, tile_R), B)     # batch fastest => pe tile stays resident

    apply_dropout = bool(train) and float(dropout_p) > 0.0
    seed_arr = jnp.asarray([seed], dtype=jnp.int32)

    kernel = functools.partial(
        _pe_kernel, dropout_p=float(dropout_p), apply_dropout=apply_dropout,
        total_rows=R, row_block=tile_R, cols=C)

    cost = pl.CostEstimate(
        flops=S * B * D,
        transcendentals=0,
        bytes_accessed=2 * S * B * D * itemsize + S * D * itemsize)

    compiler_params = pltpu.CompilerParams(
        dimension_semantics=("parallel", "parallel"),
        vmem_limit_bytes=32 * 1024 * 1024)

    out = pl.pallas_call(
        kernel,
        grid=grid,
        out_shape=jax.ShapeDtypeStruct((B, R, C), dtype),
        in_specs=[
            pl.BlockSpec(memory_space=pltpu.MemorySpace.SMEM),     # seed scalar
            pl.BlockSpec((1, tile_R, C), lambda r, b: (b, r, 0)),  # x tile
            pl.BlockSpec((tile_R, C), lambda r, b: (r, 0)),        # pe tile (batch-invariant)
        ],
        out_specs=pl.BlockSpec((1, tile_R, C), lambda r, b: (b, r, 0)),
        compiler_params=compiler_params,
        cost_estimate=cost,
    )(seed_arr, x3, pe2)

    return jnp.transpose(out.reshape(B, S, D), (1, 0, 2))


if __name__ == "__main__":
    # Small shapes consistent with the module: seq=8, batch=2, dim_model=32.
    dim_model = 32
    max_len = 16
    dropout_p = 0.1
    seq_len, batch = 8, 2

    key = jax.random.PRNGKey(0)
    token_embedding = jax.random.normal(
        key, (seq_len, batch, dim_model), dtype=jnp.float32)
    pos_encoding = make_pos_encoding(dim_model, max_len)

    # Eval-mode forward (dropout is identity in eval).
    out = positional_encoding_forward(
        token_embedding, pos_encoding, dropout_p=dropout_p, train=False)
    out = jax.block_until_ready(out)

    ref = token_embedding + pos_encoding[:seq_len]
    assert out.shape == (seq_len, batch, dim_model)
    assert jnp.allclose(out, ref, atol=1e-6, rtol=1e-6)

    # Training-mode (dropout) path: deterministic counter-hash mask.
    out_train = positional_encoding_forward(
        token_embedding, pos_encoding, dropout_p=dropout_p, train=True, seed=123)
    out_train = jax.block_until_ready(out_train)
    assert out_train.shape == (seq_len, batch, dim_model)
    # Every element is either exactly dropped (0) or kept and scaled by 1/(1-p).
    scaled_ref = ref / (1.0 - dropout_p)
    ok = jnp.isclose(out_train, scaled_ref, atol=1e-5, rtol=1e-5) | (out_train == 0.0)
    assert bool(jnp.all(ok))
    assert bool(jnp.any(out_train != 0.0))

    print("KERNEL_OK")
</pallas_src>

<mosaic_0001>
module attributes {stable_mosaic.version = 11 : i64} {
  func.func @_pe_kernel(%arg0: i32, %arg1: i32, %arg2: memref<1xi32, #tpu.memory_space<smem>>, %arg3: memref<1x2x128xf32, #tpu.memory_space<vmem>>, %arg4: memref<2x128xf32, #tpu.memory_space<vmem>>, %arg5: memref<1x2x128xf32, #tpu.memory_space<vmem>>) attributes {dimension_semantics = [#tpu.dimension_semantics<parallel>, #tpu.dimension_semantics<parallel>], iteration_bounds = array<i64: 1, 2>, scalar_prefetch = 0 : i64, scratch_operands = 0 : i64, tpu.core_type = #tpu.core_type<tc>, window_params = [{transform_indices = @transform_0, window_bounds = array<i64: 1>}, {transform_indices = @transform_1, window_bounds = array<i64: 1, 2, 128>}, {transform_indices = @transform_2, window_bounds = array<i64: 2, 128>}, {transform_indices = @transform_3, window_bounds = array<i64: 1, 2, 128>}]} {
    %c0 = arith.constant 0 : index
    %c0_0 = arith.constant 0 : index
    %c0_1 = arith.constant 0 : index
    %0 = vector.load %arg3[%c0, %c0_0, %c0_1] : memref<1x2x128xf32, #tpu.memory_space<vmem>>, vector<1x2x128xf32>
    %c0_2 = arith.constant 0 : index
    %c0_3 = arith.constant 0 : index
    %1 = vector.load %arg4[%c0_2, %c0_3] : memref<2x128xf32, #tpu.memory_space<vmem>>, vector<2x128xf32>
    %2 = vector.shape_cast %1 : vector<2x128xf32> to vector<1x2x128xf32>
    %3 = arith.addf %0, %2 : vector<1x2x128xf32>
    %c0_4 = arith.constant 0 : index
    %c0_5 = arith.constant 0 : index
    %c0_6 = arith.constant 0 : index
    %4 = vector.load %arg5[%c0_4, %c0_5, %c0_6] : memref<1x2x128xf32, #tpu.memory_space<vmem>>, vector<1x2x128xf32>
    tpu.vector_store %arg5[%c0_4, %c0_5, %c0_6], %3 {strides = array<i32>} : memref<1x2x128xf32, #tpu.memory_space<vmem>>, vector<1x2x128xf32>,
    return
  }
  func.func @transform_0(%arg0: i32, %arg1: i32) -> i32 {
    %c0_i32 = arith.constant 0 : i32
    %c0_i32_0 = arith.constant 0 : i32
    return %c0_i32 : i32
  }
  func.func @transform_1(%arg0: i32, %arg1: i32) -> (i32, i32, i32) {
    %c0_i32 = arith.constant 0 : i32
    %c0_i32_0 = arith.constant 0 : i32
    return %arg1, %arg0, %c0_i32 : i32, i32, i32
  }
  func.func @transform_2(%arg0: i32, %arg1: i32) -> (i32, i32) {
    %c0_i32 = arith.constant 0 : i32
    %c0_i32_0 = arith.constant 0 : i32
    return %arg0, %c0_i32 : i32, i32
  }
  func.func @transform_3(%arg0: i32, %arg1: i32) -> (i32, i32, i32) {
    %c0_i32 = arith.constant 0 : i32
    %c0_i32_0 = arith.constant 0 : i32
    return %arg1, %arg0, %c0_i32 : i32, i32, i32
  }
}

</mosaic_0001>

<llo_original>
// kernel: tpu_custom_call.1
$region0: #{tpu_custom_call.1}
  #allocation0 [shape = 'u32[]', space=smem, size = 0x4, offset = 0x4, fixed_abs, tag = 'smem constant byte address 0x4 - core index']
  #allocation1 [shape = 'u32[144,128]{1,0:T(1,128)}', space=vmem, size = 0x12000, scoped, tag = 'internal scratch']
  #allocation2 [shape = 's32[1]{0:T(128)S(6)}', space=smem, size = 0x200, scoped, tag = 'scoped memory for tpu_custom_call.1']
  %s0 = inlined_call_operand.<no memory space> [shape: s32[1], index: 0, kind: input, shape index: {}]
  %s1 = inlined_call_operand.hbm [shape: f32[2,2,128], index: 1, kind: input, shape index: {}]
  %s2 = inlined_call_operand.vmem [shape: f32[2,128], index: 2, kind: input, shape index: {}]
  %s3 = inlined_call_operand.hbm [shape: f32[2,2,128], index: 3, kind: output, shape index: {}]
  %s4 = sld [smem:[#allocation0]]
  $region49: #{tpu_custom_call.1} parent=0
    _
  %s6 = ssub.s32 1, %s4
  %s7 = scalar_select 0, %s6, %s4
  %8 = sst [smem:[#allocation2]] %s0
  $region1: #{tpu_custom_call.1} parent=0
    #allocation3 [shape = 'u8[2048]{0}', space=vmem, size = 0x800, scoped, tag = 'input window, operand 1']
    #allocation4 [shape = 's32[2]{0}', space=sflag, size = 0x8, scoped, tag = 'scoped memory for tpu_custom_call.1']
    #allocation5 [shape = 's32[2]{0}', space=sflag, size = 0x8, scoped, tag = 'scoped memory for tpu_custom_call.1']
    #allocation6 [shape = 'u8[2048]{0}', space=vmem, size = 0x800, scoped, tag = 'output window, operand 0']
    %9 = vsyncpa [#allocation4], 0
    %s10 = scalar_lea.sflag [#allocation4], 1
    %11 = vsyncpa %s10, 0
    %12 = vsyncpa [#allocation5], 0
    %s13 = scalar_lea.sflag [#allocation5], 1
    %14 = vsyncpa %s13, 0
    loop: start=0, step=1, limit=4
    $region2: #{tpu_custom_call.1} parent=1 // loop_pre_header
      _
    $region3: #{tpu_custom_call.1} parent=1 // loop_header
      %s16 = sphi 0, %s20
      %p17 = scmp.ge.s32.totalorder %s16, 4
      %s23 = sphi 0, %s35
      %s24 = sphi 0, %s31
      %s25 = sphi 0, %s23
      %s26 = sphi 0, %s24
      %s27 = sphi 0, %s25
      %s28 = sphi 0, %s26
      %s36 = sphi 0, %s36
      %s38 = sphi 0, %s36
      %s39 = sphi 0, %s38
      %s53 = sphi 0, %s39
      %s61 = sphi 0, %s63
      %s64 = sphi 0, %s61
      %s65 = sphi 0, %s64
      %s81 = sphi 0, %s65
      %s87 = sphi 0, %s89
      %s90 = sphi 0, %s87
      %s91 = sphi 0, %s90
      %s107 = sphi 0, %s91
      %s115 = sphi 0, %s117
      %s118 = sphi 0, %s115
      %s119 = sphi 0, %s118
      %s135 = sphi 0, %s119
    $region4: #{tpu_custom_call.1} parent=1 // loop_header_branch
      %19 = sbr.rel (%p17) target = $region8
    $region5: #{tpu_custom_call.1} parent=1 // loop_body
      %s21 = ssub.s32 %s16, 1
      %s22 = ssub.s32 %s16, 2
      %s29 = sadd.s32 1, %s24
      %p30 = scmp.ge.s32.totalorder %s29, 2
      %s31 = scalar_select %p30, 0, %s29
      %s32 = sadd.s32 1, %s23
      %s33 = scalar_select %p30, %s32, %s23
      %p34 = scmp.ge.s32.totalorder %s33, 1
      %s35 = scalar_select %p34, 0, %s33
      %s37 = sadd.s32 %s36, 1
      %p40 = scmp.eq.s32.totalorder %s16, 1
      %p41 = scmp.ne.s32.totalorder %s36, %s38
      %p42 = scmp.eq.s32.totalorder %s16, 0
      %p43 = por %p41, %p42
      %p44 = scmp.ne.s32.totalorder %s36, %s38
      %p45 = scmp.eq.s32.totalorder %s21, 1
      %p46 = por %p44, %p45
      %p47 = scmp.ne.s32.totalorder %s38, %s39
      %p48 = scmp.eq.s32.totalorder %s21, 0
      %p49 = por %p47, %p48
      %p50 = scmp.ne.s32.totalorder %s38, %s39
      %p51 = scmp.eq.s32.totalorder %s22, 1
      %p52 = por %p50, %p51
      %p54 = scmp.ne.s32.totalorder %s39, %s53
      %p55 = scmp.eq.s32.totalorder %s22, 0
      %p56 = por %p54, %p55
      %s57 = ssub.s32 %s24, %s31
      %s58 = ssub.s32 %s23, %s35
      %s59 = sor.u32 %s57, %s58
      %p60 = scmp.eq.s32.totalorder %s59, 0
      %s62 = sadd.s32 %s61, 1
      %s63 = scalar_select %p60, %s61, %s62
      %p66 = pneg %p60
      %p67 = scmp.eq.s32.totalorder %s16, 1
      %p68 = por %p66, %p67
      %p69 = scmp.ne.s32.totalorder %s61, %s64
      %p70 = scmp.eq.s32.totalorder %s16, 0
      %p71 = por %p69, %p70
      %p72 = scmp.ne.s32.totalorder %s61, %s64
      %p73 = scmp.eq.s32.totalorder %s21, 1
      %p74 = por %p72, %p73
      %p75 = scmp.ne.s32.totalorder %s64, %s65
      %p76 = scmp.eq.s32.totalorder %s21, 0
      %p77 = por %p75, %p76
      %p78 = scmp.ne.s32.totalorder %s64, %s65
      %p79 = scmp.eq.s32.totalorder %s22, 1
      %p80 = por %p78, %p79
      %p82 = scmp.ne.s32.totalorder %s65, %s81
      %p83 = scmp.eq.s32.totalorder %s22, 0
      %p84 = por %p82, %p83
      %s85 = ssub.s32 %s23, %s35
      %p86 = scmp.eq.s32.totalorder %s85, 0
      %s88 = sadd.s32 %s87, 1
      %s89 = scalar_select %p86, %s87, %s88
      %p92 = pneg %p86
      %p93 = scmp.eq.s32.totalorder %s16, 1
      %p94 = por %p92, %p93
      %p95 = scmp.ne.s32.totalorder %s87, %s90
      %p96 = scmp.eq.s32.totalorder %s16, 0
      %p97 = por %p95, %p96
      %p98 = scmp.ne.s32.totalorder %s87, %s90
      %p99 = scmp.eq.s32.totalorder %s21, 1
      %p100 = por %p98, %p99
      %p101 = scmp.ne.s32.totalorder %s90, %s91
      %p102 = scmp.eq.s32.totalorder %s21, 0
      %p103 = por %p101, %p102
      %p104 = scmp.ne.s32.totalorder %s90, %s91
      %p105 = scmp.eq.s32.totalorder %s22, 1
      %p106 = por %p104, %p105
      %p108 = scmp.ne.s32.totalorder %s91, %s107
      %p109 = scmp.eq.s32.totalorder %s22, 0
      %p110 = por %p108, %p109
      %s111 = ssub.s32 %s24, %s31
      %s112 = ssub.s32 %s23, %s35
      %s113 = sor.u32 %s111, %s112
      %p114 = scmp.eq.s32.totalorder %s113, 0
      %s116 = sadd.s32 %s115, 1
      %s117 = scalar_select %p114, %s115, %s116
      %p120 = pneg %p114
      %p121 = scmp.eq.s32.totalorder %s16, 1
      %p122 = por %p120, %p121
      %p123 = scmp.ne.s32.totalorder %s115, %s118
      %p124 = scmp.eq.s32.totalorder %s16, 0
      %p125 = por %p123, %p124
      %p126 = scmp.ne.s32.totalorder %s115, %s118
      %p127 = scmp.eq.s32.totalorder %s21, 1
      %p128 = por %p126, %p127
      %p129 = scmp.ne.s32.totalorder %s118, %s119
      %p130 = scmp.eq.s32.totalorder %s21, 0
      %p131 = por %p129, %p130
      %p132 = scmp.ne.s32.totalorder %s118, %s119
      %p133 = scmp.eq.s32.totalorder %s22, 1
      %p134 = por %p132, %p133
      %p136 = scmp.ne.s32.totalorder %s119, %s135
      %p137 = scmp.eq.s32.totalorder %s22, 0
      %p138 = por %p136, %p137
      %p139 = scmp.le.s32.totalorder 1, %s16
      %p140 = scmp.lt.s32.totalorder %s16, 3
      %p141 = pnand %p139, %p140
      %p142 = pneg %p141
      // Predicated region
      $region9: #{tpu_custom_call.1} parent=5 // pred_check
        _
      $region10: #{tpu_custom_call.1} parent=5 // pred_check_branch
        %144 = sbr.rel (%p141) target = $region12
      $region11: #{tpu_custom_call.1} parent=5 // pred_region
        %s145 = ssub.s32 %s16, 1
        // Predicated region
        $region13: #{tpu_custom_call.1} parent=11 // pred_check
          %p146 = pneg %p49
        $region14: #{tpu_custom_call.1} parent=11 // pred_check_branch
          %148 = sbr.rel (%p146) target = $region16
        $region15: #{tpu_custom_call.1} parent=11 // pred_region
          _
        $region16: #{tpu_custom_call.1} parent=11 // pred_fallthru
          _
        // Predicated region
        $region17: #{tpu_custom_call.1} parent=11 // pred_check
          %p149 = pneg %p103
        $region18: #{tpu_custom_call.1} parent=11 // pred_check_branch
          %151 = sbr.rel (%p149) target = $region20
        $region19: #{tpu_custom_call.1} parent=11 // pred_region
          %p152 = scmp.lt.s32.totalorder %s25, 0
          %s153 = scalar_select %p152, %s25, 0
          %s154 = smul.addr %s153, 2
          %s155 = scalar_lea.vmem %s2, %s154
        $region20: #{tpu_custom_call.1} parent=11 // pred_fallthru
          _
      $region12: #{tpu_custom_call.1} parent=5 // pred_fallthru
        _
      %p156 = scmp.lt.s32.totalorder %s16, 2
      // Predicated region
      $region21: #{tpu_custom_call.1} parent=5 // pred_check
        %p157 = pneg %p156
      $region22: #{tpu_custom_call.1} parent=5 // pred_check_branch
        %159 = sbr.rel (%p157) target = $region24
      $region23: #{tpu_custom_call.1} parent=5 // pred_region
        // Predicated region
        $region25: #{tpu_custom_call.1} parent=23 // pred_check
          %p160 = pneg %p71
        $region26: #{tpu_custom_call.1} parent=23 // pred_check_branch
          %162 = sbr.rel (%p160) target = $region28
        $region27: #{tpu_custom_call.1} parent=23 // pred_region
          %s163 = sand.u32 %s61, 1
          %s164 = scalar_lea.sflag [#allocation4], %s163
          %s165 = sand.u32 %s61, 1
          %s166 = smul.addr %s165, 2
          %s167 = scalar_lea.vmem [#allocation3], %s166
          %s169 = ssub.s32 32, 32
          %170 = vsyncadd %s164, %s169
          %s171 = sadd.s32 %s23, %s24
          %s172 = smul.addr %s171, 32
          %s173 = scalar_lea.hbm %s1, %s172
          %s175 = sshll.u32 %s167, 4
          %s176 = int_to_ptr.vmem [resolvable:$true] %s175
          %178 = dma.hbm_to_vmem [thread:$0]  %s173, 32, %s176, %s164
        $region28: #{tpu_custom_call.1} parent=23 // pred_fallthru
          _
      $region24: #{tpu_custom_call.1} parent=5 // pred_fallthru
        _
      %p179 = scmp.le.s32.totalorder 1, %s16
      %p180 = scmp.lt.s32.totalorder %s16, 3
      %p181 = pnand %p179, %p180
      %p182 = pneg %p181
      // Predicated region
      $region29: #{tpu_custom_call.1} parent=5 // pred_check
        _
      $region30: #{tpu_custom_call.1} parent=5 // pred_check_branch
        %184 = sbr.rel (%p181) target = $region32
      $region31: #{tpu_custom_call.1} parent=5 // pred_region
        %s185 = ssub.s32 %s16, 1
        %s186 = sand.u32 %s64, 1
        %s187 = scalar_lea.sflag [#allocation4], %s186
        %s188 = sand.u32 %s64, 1
        %s189 = smul.addr %s188, 2
        %s190 = scalar_lea.vmem [#allocation3], %s189
        // Predicated region
        $region33: #{tpu_custom_call.1} parent=31 // pred_check
          %p191 = pneg %p77
        $region34: #{tpu_custom_call.1} parent=31 // pred_check_branch
          %193 = sbr.rel (%p191) target = $region36
        $region35: #{tpu_custom_call.1} parent=31 // pred_region
          %194 = dma.done %s187, 32
        $region36: #{tpu_custom_call.1} parent=31 // pred_fallthru
          _
        %p195 = pneg %p49
        %p196 = pneg %p46
        %s197 = sand.u32 %s64, 1
        %s198 = scalar_lea.sflag [#allocation4], %s197
        %s199 = sand.u32 %s64, 1
        %s200 = smul.addr %s199, 2
        %s201 = scalar_lea.vmem [#allocation3], %s200
        %p202 = pneg %p77
        %p203 = pneg %p74
        %p204 = scmp.lt.s32.totalorder %s25, 0
        %s205 = scalar_select %p204, %s25, 0
        %s206 = smul.addr %s205, 2
        %s207 = scalar_lea.vmem %s2, %s206
        %p208 = pneg %p103
        %p209 = pneg %p100
        %p210 = pneg %p131
        %p211 = pneg %p128
        %s212 = sand.u32 %s118, 1
        %s213 = scalar_lea.sflag [#allocation5], %s212
        %s214 = sand.u32 %s118, 1
        %s215 = smul.addr %s214, 2
        %s216 = scalar_lea.vmem [#allocation6], %s215
        %p217 = scmp.lt.s32.totalorder %s25, 0
        %s218 = scalar_select %p217, %s25, 0
        %s219 = smul.addr %s218, 2
        %s220 = scalar_lea.vmem %s2, %s219
        %v221 = vld [vmem:[%s190] sm:$0x3]
        %v222 = vld [vmem:[%s220] sm:$0x3]
        %v223 = vadd.f32 %v221, %v222
        %224 = vst [vmem:[%s216] sm:$0x3] %v223
        %s225 = sand.u32 %s118, 1
        %s226 = scalar_lea.sflag [#allocation5], %s225
        %s227 = sand.u32 %s118, 1
        %s228 = smul.addr %s227, 2
        %s229 = scalar_lea.vmem [#allocation6], %s228
        // Predicated region
        $region37: #{tpu_custom_call.1} parent=31 // pred_check
          %p230 = pneg %p128
        $region38: #{tpu_custom_call.1} parent=31 // pred_check_branch
          %232 = sbr.rel (%p230) target = $region40
        $region39: #{tpu_custom_call.1} parent=31 // pred_region
          %s234 = ssub.s32 32, 32
          %235 = vsyncadd %s226, %s234
          %s236 = sadd.s32 %s25, %s26
          %s237 = smul.addr %s236, 32
          %s238 = scalar_lea.hbm %s3, %s237
          %s240 = sshll.u32 %s229, 4
          %s241 = int_to_ptr.vmem [resolvable:$true] %s240
          %243 = dma.vmem_to_hbm [thread:$0]  %s241, 32, %s238, %s226
        $region40: #{tpu_custom_call.1} parent=31 // pred_fallthru
          _
      $region32: #{tpu_custom_call.1} parent=5 // pred_fallthru
        _
      %p244 = scmp.le.s32.totalorder 2, %s16
      // Predicated region
      $region41: #{tpu_custom_call.1} parent=5 // pred_check
        %p245 = pneg %p244
      $region42: #{tpu_custom_call.1} parent=5 // pred_check_branch
        %247 = sbr.rel (%p245) target = $region44
      $region43: #{tpu_custom_call.1} parent=5 // pred_region
        %s248 = ssub.s32 %s16, 2
        // Predicated region
        $region45: #{tpu_custom_call.1} parent=43 // pred_check
          %p249 = pneg %p134
        $region46: #{tpu_custom_call.1} parent=43 // pred_check_branch
          %251 = sbr.rel (%p249) target = $region48
        $region47: #{tpu_custom_call.1} parent=43 // pred_region
          %s252 = sand.u32 %s119, 1
          %s253 = scalar_lea.sflag [#allocation5], %s252
          %s254 = sand.u32 %s119, 1
          %s255 = smul.addr %s254, 2
          %s256 = scalar_lea.vmem [#allocation6], %s255
          %257 = dma.done %s253, 32
        $region48: #{tpu_custom_call.1} parent=43 // pred_fallthru
          _
      $region44: #{tpu_custom_call.1} parent=5 // pred_fallthru
        _
    $region6: #{tpu_custom_call.1} parent=1 // loop_footer
      %s20 = sadd.s32 1, %s16
    $region7: #{tpu_custom_call.1} parent=1 // loop_footer_branch
      %15 = sbr.rel target = $region3
    $region8: #{tpu_custom_call.1} parent=1 // loop_exit
      _
    %258 = vsyncpa [#allocation4], 1
    %s259 = scalar_lea.sflag [#allocation4], 1
    %260 = vsyncpa %s259, 1
    %261 = vsyncpa [#allocation5], 1
    %s262 = scalar_lea.sflag [#allocation5], 1
    %263 = vsyncpa %s262, 1

</llo_original>
